<compile_context>
chip_gen: v5e
topology: v5e:2x2
jax: 0.10.0
libtpu: 0.0.40
codegen_flags: <defaults>
</compile_context>

<pallas_src>
import functools

import jax
import jax.numpy as jnp
from jax.experimental import pallas as pl
from jax.experimental.pallas import tpu as pltpu


def _round_up(n: int, m: int) -> int:
    return ((n + m - 1) // m) * m


def afm_kernel(x_ref, p_ref, out_ref, *, num_fields, emb_dim):
    """One batch tile.

    x_ref   : (BT, F*K)  flattened feature embeddings (lane-dense slab)
    p_ref   : (1, F*K)   projection vector p, zero-padded past lane K
    out_ref : (1, BT)    sigmoid(logits), lane-major row
    """
    F, K = num_fields, emb_dim
    x = x_ref[...].astype(jnp.float32)        # (BT, F*K); no-op cast if f32 input
    xsq = x * x

    def field_sum(v):
        # Every lane j of the result holds sum_f v[b, f*K + (j % K)]:
        # cyclic lane rolls by multiples of K cover all F field groups.
        if F & (F - 1) == 0:                  # power-of-two F: log-tree of rolls
            s = v
            shift = K
            while shift < F * K:
                s = s + pltpu.roll(s, shift=shift, axis=1)
                shift *= 2
            return s
        s = v                                 # general F: linear roll chain
        for f in range(1, F):
            s = s + pltpu.roll(v, shift=f * K, axis=1)
        return s

    # FMaggregator, exact f32 on VPU/XLU (MXU stays idle for the projection):
    #   s[b, j]  = sum_f x[b, f, j % K],  sq[b, j] = sum_f x[b, f, j % K]^2
    s = field_sum(x)
    sq = field_sum(xsq)
    e = s * s - sq                            # lanes 0:K hold the true FM output

    # attention(): softmax over a length-1 axis is identically 1.0, so
    # atts * e == e exactly -> the attention MLP (wa, ba, h) never reaches the
    # output and is constant-folded away.

    # outs[b] = sum_k e[b, k] * p[k].  p is zero-padded to F*K lanes, so the
    # full-lane contraction picks out exactly the first K-lane group of e.
    # (1, BT) result -> dense lane-major store / dense HBM writeback.
    outs = jax.lax.dot_general(
        p_ref[...], e, (((1,), (1,)), ((), ())),
        precision=jax.lax.Precision.HIGHEST,
        preferred_element_type=jnp.float32)   # (1, BT)
    out_ref[...] = 1.0 / (1.0 + jnp.exp(-outs))   # sigmoid


def afm_forward_pallas(feature_embs, wa, ba, h, p, *, block_b=8192,
                       bf16_inputs=False):
    """AFM forward. feature_embs: (B, F, K) f32; returns (B,) f32 logits.

    wa/ba/h are accepted for interface parity with the PyTorch module but do
    not influence the forward output (softmax over a size-1 axis == 1.0).
    """
    del wa, ba, h
    B, F, K = feature_embs.shape
    fk = F * K

    # Batch tile: multiple of 8 sublanes, capped at block_b (sweepable; 8192
    # keeps the x tile at fk=128 to 4 MiB -> ~16-24 MiB total VMEM incl.
    # double buffering and intermediates).
    bt = min(_round_up(block_b, 8), _round_up(B, 8))
    # v7x megacore: keep at least 2 grid steps when the batch allows so the
    # ("parallel",) batch axis shards across both TensorCores (harmless on
    # single-TC chips).
    if _round_up(B, 8) > 8 and pl.cdiv(B, bt) < 2:
        bt = _round_up(pl.cdiv(B, 2), 8)
    n_blk = pl.cdiv(B, bt)
    b_pad = n_blk * bt

    # Lane-dense (B, F*K) slab; pad the batch to a whole number of tiles.
    # Padded rows produce sigmoid(0)=0.5 and are sliced off after the call.
    in_dtype = jnp.bfloat16 if bf16_inputs else jnp.float32
    x2d = feature_embs.reshape(B, fk).astype(in_dtype)
    if b_pad != B:
        x2d = jnp.pad(x2d, ((0, b_pad - B), (0, 0)))

    # p zero-padded to F*K lanes: the in-kernel projection contraction then
    # reads the FM interaction exactly out of the first K-lane group of e.
    p_row = jnp.reshape(p, (1, K)).astype(jnp.float32)
    p_pad = jnp.pad(p_row, ((0, 0), (0, fk - K)))

    kernel = functools.partial(afm_kernel, num_fields=F, emb_dim=K)

    out = pl.pallas_call(
        kernel,
        out_shape=jax.ShapeDtypeStruct((n_blk, 1, bt), jnp.float32),
        grid=(n_blk,),
        in_specs=[
            # Streamed batch tiles of the embeddings (auto double-buffered).
            pl.BlockSpec((bt, fk), lambda i: (i, 0)),
            # Tiny constant: same block every step -> stays VMEM-resident.
            pl.BlockSpec((1, fk), lambda i: (0, 0)),
        ],
        # Lane-dense output row per tile; leading grid dim squeezed in-kernel.
        out_specs=pl.BlockSpec((None, 1, bt), lambda i: (i, 0, 0)),
        compiler_params=pltpu.CompilerParams(
            dimension_semantics=("parallel",),   # megacore-shard the batch
            vmem_limit_bytes=32 * 1024 * 1024,   # safe on v5e/v6e/v7x
        ),
    )(x2d, p_pad)

    return out.reshape(b_pad)[:B]                 # drop padding; torch.squeeze


def afm_forward_reference(feature_embs, wa, ba, h, p):
    """Plain-JAX mirror of AFM.forward (including the no-op attention branch)."""
    hp = jax.lax.Precision.HIGHEST
    e = jnp.sum(feature_embs, axis=1) ** 2 - jnp.sum(feature_embs ** 2, axis=1)
    a = jnp.maximum(jnp.dot(e, wa, precision=hp) + ba, 0.0)
    att_logit = jnp.dot(a, h, precision=hp)
    atts = jax.nn.softmax(att_logit, axis=1)       # axis of size 1 -> all 1.0
    outs = jnp.dot(atts * e, p, precision=hp)
    return jax.nn.sigmoid(jnp.squeeze(outs, axis=-1))


if __name__ == "__main__":
    # Small, deterministic synthetic configuration (mirrors AFM.__init__ shapes).
    B = 8               # batch of (u, i) pairs
    n_user_feat = 2     # columns of user_df
    n_item_feat = 2     # columns of item_df
    F = n_user_feat + n_item_feat
    K = 32              # embedding dim k
    T = 16              # attention dim t
    n_features = 24     # embedding vocab size

    key = jax.random.PRNGKey(0)
    k_emb, k_wa, k_ba, k_h, k_p, k_u, k_i, k_u2, k_i2 = jax.random.split(key, 9)

    # nn.Embedding(n_features, K, max_norm=1): init N(0,1), renorm rows to L2 <= 1.
    emb_table = jax.random.normal(k_emb, (n_features, K), dtype=jnp.float32)
    norms = jnp.linalg.norm(emb_table, axis=-1, keepdims=True)
    emb_table = emb_table * jnp.where(norms > 1.0, 1.0 / (norms + 1e-7), 1.0)

    # nn.Linear(K, T) weight as (K, T) for x @ W, plus bias. (Dead in forward.)
    lim_wa = (6.0 / (K + T)) ** 0.5
    wa = jax.random.uniform(k_wa, (K, T), jnp.float32, -lim_wa, lim_wa)
    lim_b = 1.0 / (K ** 0.5)
    ba = jax.random.uniform(k_ba, (1, T), jnp.float32, -lim_b, lim_b)

    # h: (T, 1) (dead in forward), p: (K, 1), xavier-uniform.
    lim_h = (6.0 / (T + 1)) ** 0.5
    h = jax.random.uniform(k_h, (T, 1), jnp.float32, -lim_h, lim_h)
    lim_p = (6.0 / (K + 1)) ** 0.5
    p = jax.random.uniform(k_p, (K, 1), jnp.float32, -lim_p, lim_p)

    # Synthetic user_df / item_df lookups -> (B, F) index rows, then gather (glue).
    # TODO(synk): the pandas .loc lookup + embedding gather is data-dependent
    # indexing and stays in plain-JAX glue outside the kernel.
    user_idx = jax.random.randint(k_u, (B, n_user_feat), 0, n_features // 2)
    item_idx = jax.random.randint(k_i, (B, n_item_feat), n_features // 2, n_features)
    all_feature_index = jnp.concatenate([user_idx, item_idx], axis=1)   # (B, F)
    feature_embs = emb_table[all_feature_index]                         # (B, F, K)

    logit = jax.block_until_ready(afm_forward_pallas(feature_embs, wa, ba, h, p))
    ref = afm_forward_reference(feature_embs, wa, ba, h, p)
    assert logit.shape == (B,)
    assert jnp.allclose(logit, ref, atol=1e-4, rtol=1e-4), \
        float(jnp.max(jnp.abs(logit - ref)))

    # Multi-tile grid path: batch that is not a multiple of the block size.
    B2 = 600
    u2 = jax.random.randint(k_u2, (B2, n_user_feat), 0, n_features // 2)
    i2 = jax.random.randint(k_i2, (B2, n_item_feat), n_features // 2, n_features)
    fe2 = emb_table[jnp.concatenate([u2, i2], axis=1)]                  # (B2, F, K)
    logit2 = jax.block_until_ready(
        afm_forward_pallas(fe2, wa, ba, h, p, block_b=256))
    ref2 = afm_forward_reference(fe2, wa, ba, h, p)
    assert logit2.shape == (B2,)
    assert jnp.allclose(logit2, ref2, atol=1e-4, rtol=1e-4), \
        float(jnp.max(jnp.abs(logit2 - ref2)))

    # Default tile size path: exercises the "keep n_blk >= 2" megacore split.
    logit3 = jax.block_until_ready(afm_forward_pallas(fe2, wa, ba, h, p))
    assert logit3.shape == (B2,)
    assert jnp.allclose(logit3, ref2, atol=1e-4, rtol=1e-4), \
        float(jnp.max(jnp.abs(logit3 - ref2)))

    print("KERNEL_OK")
</pallas_src>

<mosaic_0001>
module attributes {stable_mosaic.version = 11 : i64} {
  func.func @afm_kernel(%arg0: i32, %arg1: memref<8x128xf32, #tpu.memory_space<vmem>>, %arg2: memref<1x128xf32, #tpu.memory_space<vmem>>, %arg3: memref<1x1x8xf32, #tpu.memory_space<vmem>>) attributes {dimension_semantics = [#tpu.dimension_semantics<parallel>], iteration_bounds = array<i64: 1>, scalar_prefetch = 0 : i64, scratch_operands = 0 : i64, tpu.core_type = #tpu.core_type<tc>, window_params = [{transform_indices = @transform_0, window_bounds = array<i64: 8, 128>}, {pipeline_mode = #tpu.pipeline_mode<synchronous>, transform_indices = @transform_1, window_bounds = array<i64: 1, 128>}, {transform_indices = @transform_2, window_bounds = array<i64: 1, 1, 8>}]} {
    %c0 = arith.constant 0 : index
    %c0_0 = arith.constant 0 : index
    %0 = vector.load %arg1[%c0, %c0_0] : memref<8x128xf32, #tpu.memory_space<vmem>>, vector<8x128xf32>
    %1 = arith.mulf %0, %0 : vector<8x128xf32>
    %c32_i32 = arith.constant 32 : i32
    %2 = tpu.dynamic_rotate %0 by %c32_i32 dim 1 : vector<8x128xf32>, i32 -> vector<8x128xf32>
    %3 = arith.addf %0, %2 : vector<8x128xf32>
    %c64_i32 = arith.constant 64 : i32
    %4 = tpu.dynamic_rotate %3 by %c64_i32 dim 1 : vector<8x128xf32>, i32 -> vector<8x128xf32>
    %5 = arith.addf %3, %4 : vector<8x128xf32>
    %c32_i32_1 = arith.constant 32 : i32
    %6 = tpu.dynamic_rotate %1 by %c32_i32_1 dim 1 : vector<8x128xf32>, i32 -> vector<8x128xf32>
    %7 = arith.addf %1, %6 : vector<8x128xf32>
    %c64_i32_2 = arith.constant 64 : i32
    %8 = tpu.dynamic_rotate %7 by %c64_i32_2 dim 1 : vector<8x128xf32>, i32 -> vector<8x128xf32>
    %9 = arith.addf %7, %8 : vector<8x128xf32>
    %10 = arith.mulf %5, %5 : vector<8x128xf32>
    %11 = arith.subf %10, %9 : vector<8x128xf32>
    %c0_3 = arith.constant 0 : index
    %c0_4 = arith.constant 0 : index
    %12 = vector.load %arg2[%c0_3, %c0_4] : memref<1x128xf32, #tpu.memory_space<vmem>>, vector<1x128xf32>
    %cst = arith.constant dense<0.000000e+00> : vector<1x8xf32>
    %13 = tpu.matmul %12, %11, %cst {dimension_numbers = #tpu.dot_dimension_numbers<[1], [1], [0], [0], [0, 0, 1, 0], [], []>, precision = #tpu.contract_precision<fp32>} : vector<1x128xf32>, vector<8x128xf32>, vector<1x8xf32> -> vector<1x8xf32>
    %cst_5 = arith.constant 0.000000e+00 : f32
    %14 = vector.broadcast %cst_5 : f32 to vector<1x8xf32>
    %15 = arith.subf %14, %13 : vector<1x8xf32>
    %16 = math.exp %15 : vector<1x8xf32>
    %cst_6 = arith.constant 1.000000e+00 : f32
    %17 = vector.broadcast %cst_6 : f32 to vector<1x8xf32>
    %18 = arith.addf %17, %16 : vector<1x8xf32>
    %cst_7 = arith.constant 1.000000e+00 : f32
    %19 = vector.broadcast %cst_7 : f32 to vector<1x8xf32>
    %20 = arith.divf %19, %18 : vector<1x8xf32>
    %c0_8 = arith.constant 0 : index
    %c0_9 = arith.constant 0 : index
    %c0_10 = arith.constant 0 : index
    %21 = vector.load %arg3[%c0_8, %c0_9, %c0_10] : memref<1x1x8xf32, #tpu.memory_space<vmem>>, vector<1x1x8xf32>
    %22 = vector.shape_cast %21 : vector<1x1x8xf32> to vector<1x8xf32>
    %23 = vector.shape_cast %20 : vector<1x8xf32> to vector<1x1x8xf32>
    tpu.vector_store %arg3[%c0_8, %c0_9, %c0_10], %23 {strides = array<i32>} : memref<1x1x8xf32, #tpu.memory_space<vmem>>, vector<1x1x8xf32>,
    return
  }
  func.func @transform_0(%arg0: i32) -> (i32, i32) {
    %c0_i32 = arith.constant 0 : i32
    %c0_i32_0 = arith.constant 0 : i32
    return %arg0, %c0_i32 : i32, i32
  }
  func.func @transform_1(%arg0: i32) -> (i32, i32) {
    %c0_i32 = arith.constant 0 : i32
    %c0_i32_0 = arith.constant 0 : i32
    %c0_i32_1 = arith.constant 0 : i32
    return %c0_i32, %c0_i32_0 : i32, i32
  }
  func.func @transform_2(%arg0: i32) -> (i32, i32, i32) {
    %c0_i32 = arith.constant 0 : i32
    %c0_i32_0 = arith.constant 0 : i32
    %c0_i32_1 = arith.constant 0 : i32
    return %arg0, %c0_i32, %c0_i32_0 : i32, i32, i32
  }
}

</mosaic_0001>

<llo_original>
// kernel: tpu_custom_call.1
$region0: #{tpu_custom_call.1}
  #allocation0 [shape = 'u32[]', space=smem, size = 0x4, offset = 0x4, fixed_abs, tag = 'smem constant byte address 0x4 - core index']
  #allocation1 [shape = 'u32[72,128]{1,0:T(1,128)}', space=vmem, size = 0x9000, scoped, tag = 'internal scratch']
  %s0 = inlined_call_operand.hbm [shape: f32[8,128], index: 0, kind: input, shape index: {}]
  %s1 = inlined_call_operand.hbm [shape: f32[1,128], index: 1, kind: input, shape index: {}]
  %s2 = inlined_call_operand.hbm [shape: f32[1,1,8], index: 2, kind: output, shape index: {}]
  %s3 = sld [smem:[#allocation0]]
  $region26: #{tpu_custom_call.1} parent=0
    _
  %s5 = ssub.s32 1, %s3
  %s6 = scalar_select 0, %s5, %s3
  $region1: #{tpu_custom_call.1} parent=0
    #allocation2 [shape = 'u8[4096]{0}', space=vmem, size = 0x1000, scoped, tag = 'input window, operand 0, single buffered']
    #allocation3 [shape = 's32[1]{0}', space=sflag, size = 0x4, scoped, tag = 'scoped memory for tpu_custom_call.1']
    #allocation4 [shape = 's32[1]{0}', space=sflag, size = 0x4, scoped, tag = 'scoped memory for tpu_custom_call.1']
    #allocation5 [shape = 'u8[512]{0}', space=vmem, size = 0x400, scoped, tag = 'input window, operand 1, single buffered']
    #allocation6 [shape = 's32[1]{0}', space=sflag, size = 0x4, scoped, tag = 'scoped memory for tpu_custom_call.1']
    #allocation7 [shape = 'u8[512]{0}', space=vmem, size = 0x400, scoped, tag = 'output window, operand 0, single buffered']
    %7 = vsyncpa [#allocation3], 0
    %8 = vsyncpa [#allocation6], 0
    %9 = vsyncpa [#allocation4], 0
    // Predicated region
    $region2: #{tpu_custom_call.1} parent=1 // pred_check
      _
    $region3: #{tpu_custom_call.1} parent=1 // pred_check_branch
      %11 = sbr.rel (0) target = $region5
    $region4: #{tpu_custom_call.1} parent=1 // pred_region
      %13 = vsyncadd [#allocation3], 0
      %s15 = sshll.u32 %s0, 4
      %s16 = int_to_ptr.hbm [resolvable:$true] %s15
      %s17 = sshll.u32 [#allocation2], 4
      %s18 = int_to_ptr.vmem [resolvable:$true] %s17
      %20 = dma.hbm_to_vmem [thread:$0]  %s16, 128, %s18, [#allocation3]
    $region5: #{tpu_custom_call.1} parent=1 // pred_fallthru
      _
    // Predicated region
    $region6: #{tpu_custom_call.1} parent=1 // pred_check
      _
    $region7: #{tpu_custom_call.1} parent=1 // pred_check_branch
      %22 = sbr.rel (0) target = $region9
    $region8: #{tpu_custom_call.1} parent=1 // pred_region
      %24 = vsyncadd [#allocation6], 0
      %s26 = sshll.u32 %s1, 4
      %s27 = int_to_ptr.hbm [resolvable:$true] %s26
      %s28 = sshll.u32 [#allocation5], 4
      %s29 = int_to_ptr.vmem [resolvable:$true] %s28
      %31 = dma.hbm_to_vmem [thread:$0]  %s27, 16, %s29, [#allocation6]
    $region9: #{tpu_custom_call.1} parent=1 // pred_fallthru
      _
    // Predicated region
    $region10: #{tpu_custom_call.1} parent=1 // pred_check
      _
    $region11: #{tpu_custom_call.1} parent=1 // pred_check_branch
      %33 = sbr.rel (0) target = $region13
    $region12: #{tpu_custom_call.1} parent=1 // pred_region
      %35 = dma.done [#allocation3], 128
    $region13: #{tpu_custom_call.1} parent=1 // pred_fallthru
      _
    // Predicated region
    $region14: #{tpu_custom_call.1} parent=1 // pred_check
      _
    $region15: #{tpu_custom_call.1} parent=1 // pred_check_branch
      %37 = sbr.rel (0) target = $region17
    $region16: #{tpu_custom_call.1} parent=1 // pred_region
      %39 = dma.done [#allocation6], 16
    $region17: #{tpu_custom_call.1} parent=1 // pred_fallthru
      _
    %v40 = vld [vmem:[#allocation2] sm:$0xff]
    %v41 = vmul.f32 %v40, %v40
    %42 = vrot.lane.b32.xlu0 %v40, 32
    %v43 = vpop.permute.xlu0 %42
    %v44 = vadd.f32 %v40, %v43
    %45 = vrot.lane.b32.xlu0 %v44, 64
    %v46 = vpop.permute.xlu0 %45
    %v47 = vadd.f32 %v44, %v46
    %48 = vrot.lane.b32.xlu0 %v41, 32
    %v49 = vpop.permute.xlu0 %48
    %v50 = vadd.f32 %v41, %v49
    %51 = vrot.lane.b32.xlu0 %v50, 64
    %v52 = vpop.permute.xlu0 %51
    %v53 = vadd.f32 %v50, %v52
    %v54 = vmul.f32 %v47, %v47
    %v55 = vsub.f32 %v54, %v53
    %v56 = vld [vmem:[#allocation5] sm:$0x1]
    %57 = vmatpush.xpose.msra.mxu0 0.0
    %58 = vmatpush.xpose.msra.mxu0 0.0
    %59 = vmatpush.xpose.msra.mxu0 0.0
    %60 = vmatpush.xpose.msra.mxu0 0.0
    %61 = vmatpush.xpose.msra.mxu0 0.0
    %62 = vmatpush.xpose.msra.mxu0 0.0
    %63 = vmatpush.xpose.msra.mxu0 0.0
    %64 = vmatpush.xpose.msra.mxu0 0.0
    %65 = vmatpush.xpose.msra.mxu0 0.0
    %66 = vmatpush.xpose.msra.mxu0 0.0
    %67 = vmatpush.xpose.msra.mxu0 0.0
    %68 = vmatpush.xpose.msra.mxu0 0.0
    %69 = vmatpush.xpose.msra.mxu0 0.0
    %70 = vmatpush.xpose.msra.mxu0 0.0
    %71 = vmatpush.xpose.msra.mxu0 0.0
    %v72 = vand.u32 %v55, 4294901760
    %73 = vmatpush.xpose.msra.mxu0 %v72
    %v74 = vand.u32 %v56, 4294901760
    %v75 = vsub.f32 %v56, %v74
    %v76 = vand.u32 %v75, 4294901760
    %v77 = vsub.f32 %v75, %v76
    %v78 = vand.u32 %v77, 4294901760
    %79 = vmatmul.f32.gmra.mxu0 %v78
    %v80 = vpop.f32.mrf.mxu0
    %v81 = vadd.f32 0.0, %v80
    %82 = vdwg.mxu0
    %83 = vmatpush.xpose.msra.mxu0 0.0
    %84 = vmatpush.xpose.msra.mxu0 0.0
    %85 = vmatpush.xpose.msra.mxu0 0.0
    %86 = vmatpush.xpose.msra.mxu0 0.0
    %87 = vmatpush.xpose.msra.mxu0 0.0
    %88 = vmatpush.xpose.msra.mxu0 0.0
    %89 = vmatpush.xpose.msra.mxu0 0.0
    %90 = vmatpush.xpose.msra.mxu0 0.0
    %91 = vmatpush.xpose.msra.mxu0 0.0
    %92 = vmatpush.xpose.msra.mxu0 0.0
    %93 = vmatpush.xpose.msra.mxu0 0.0
    %94 = vmatpush.xpose.msra.mxu0 0.0
    %95 = vmatpush.xpose.msra.mxu0 0.0
    %96 = vmatpush.xpose.msra.mxu0 0.0
    %97 = vmatpush.xpose.msra.mxu0 0.0
    %v98 = vand.u32 %v55, 4294901760
    %v99 = vsub.f32 %v55, %v98
    %v100 = vand.u32 %v99, 4294901760
    %v101 = vsub.f32 %v99, %v100
    %v102 = vand.u32 %v101, 4294901760
    %103 = vmatpush.xpose.msra.mxu0 %v102
    %v104 = vand.u32 %v56, 4294901760
    %105 = vmatmul.f32.gmra.mxu0 %v104
    %v106 = vpop.f32.mrf.mxu0
    %v107 = vadd.f32 %v81, %v106
    %108 = vdwg.mxu0
    %109 = vmatpush.xpose.msra.mxu0 0.0
    %110 = vmatpush.xpose.msra.mxu0 0.0
    %111 = vmatpush.xpose.msra.mxu0 0.0
    %112 = vmatpush.xpose.msra.mxu0 0.0
    %113 = vmatpush.xpose.msra.mxu0 0.0
    %114 = vmatpush.xpose.msra.mxu0 0.0
    %115 = vmatpush.xpose.msra.mxu0 0.0
    %116 = vmatpush.xpose.msra.mxu0 0.0
    %117 = vmatpush.xpose.msra.mxu0 0.0
    %118 = vmatpush.xpose.msra.mxu0 0.0
    %119 = vmatpush.xpose.msra.mxu0 0.0
    %120 = vmatpush.xpose.msra.mxu0 0.0
    %121 = vmatpush.xpose.msra.mxu0 0.0
    %122 = vmatpush.xpose.msra.mxu0 0.0
    %123 = vmatpush.xpose.msra.mxu0 0.0
    %v124 = vand.u32 %v55, 4294901760
    %v125 = vsub.f32 %v55, %v124
    %126 = vmatpush.xpose.msra.mxu0 %v125
    %v127 = vand.u32 %v56, 4294901760
    %v128 = vsub.f32 %v56, %v127
    %129 = vmatmul.f32.gmra.mxu0 %v128
    %v130 = vpop.f32.mrf.mxu0
    %v131 = vadd.f32 %v107, %v130
    %132 = vdwg.mxu0
    %133 = vmatpush.xpose.msra.mxu0 0.0
    %134 = vmatpush.xpose.msra.mxu0 0.0
    %135 = vmatpush.xpose.msra.mxu0 0.0
    %136 = vmatpush.xpose.msra.mxu0 0.0
    %137 = vmatpush.xpose.msra.mxu0 0.0
    %138 = vmatpush.xpose.msra.mxu0 0.0
    %139 = vmatpush.xpose.msra.mxu0 0.0
    %140 = vmatpush.xpose.msra.mxu0 0.0
    %141 = vmatpush.xpose.msra.mxu0 0.0
    %142 = vmatpush.xpose.msra.mxu0 0.0
    %143 = vmatpush.xpose.msra.mxu0 0.0
    %144 = vmatpush.xpose.msra.mxu0 0.0
    %145 = vmatpush.xpose.msra.mxu0 0.0
    %146 = vmatpush.xpose.msra.mxu0 0.0
    %147 = vmatpush.xpose.msra.mxu0 0.0
    %v148 = vand.u32 %v55, 4294901760
    %149 = vmatpush.xpose.msra.mxu0 %v148
    %v150 = vand.u32 %v56, 4294901760
    %v151 = vsub.f32 %v56, %v150
    %v152 = vand.u32 %v151, 4294901760
    %153 = vmatmul.f32.gmra.mxu0 %v152
    %v154 = vpop.f32.mrf.mxu0
    %v155 = vadd.f32 %v131, %v154
    %156 = vdwg.mxu0
    %157 = vmatpush.xpose.msra.mxu0 0.0
    %158 = vmatpush.xpose.msra.mxu0 0.0
    %159 = vmatpush.xpose.msra.mxu0 0.0
    %160 = vmatpush.xpose.msra.mxu0 0.0
    %161 = vmatpush.xpose.msra.mxu0 0.0
    %162 = vmatpush.xpose.msra.mxu0 0.0
    %163 = vmatpush.xpose.msra.mxu0 0.0
    %164 = vmatpush.xpose.msra.mxu0 0.0
    %165 = vmatpush.xpose.msra.mxu0 0.0
    %166 = vmatpush.xpose.msra.mxu0 0.0
    %167 = vmatpush.xpose.msra.mxu0 0.0
    %168 = vmatpush.xpose.msra.mxu0 0.0
    %169 = vmatpush.xpose.msra.mxu0 0.0
    %170 = vmatpush.xpose.msra.mxu0 0.0
    %171 = vmatpush.xpose.msra.mxu0 0.0
    %v172 = vand.u32 %v55, 4294901760
    %v173 = vsub.f32 %v55, %v172
    %v174 = vand.u32 %v173, 4294901760
    %175 = vmatpush.xpose.msra.mxu0 %v174
    %v176 = vand.u32 %v56, 4294901760
    %177 = vmatmul.f32.gmra.mxu0 %v176
    %v178 = vpop.f32.mrf.mxu0
    %v179 = vadd.f32 %v155, %v178
    %180 = vdwg.mxu0
    %181 = vmatpush.xpose.msra.mxu0 0.0
    %182 = vmatpush.xpose.msra.mxu0 0.0
    %183 = vmatpush.xpose.msra.mxu0 0.0
    %184 = vmatpush.xpose.msra.mxu0 0.0
    %185 = vmatpush.xpose.msra.mxu0 0.0
    %186 = vmatpush.xpose.msra.mxu0 0.0
    %187 = vmatpush.xpose.msra.mxu0 0.0
    %188 = vmatpush.xpose.msra.mxu0 0.0
    %189 = vmatpush.xpose.msra.mxu0 0.0
    %190 = vmatpush.xpose.msra.mxu0 0.0
    %191 = vmatpush.xpose.msra.mxu0 0.0
    %192 = vmatpush.xpose.msra.mxu0 0.0
    %193 = vmatpush.xpose.msra.mxu0 0.0
    %194 = vmatpush.xpose.msra.mxu0 0.0
    %195 = vmatpush.xpose.msra.mxu0 0.0
    %v196 = vand.u32 %v55, 4294901760
    %197 = vmatpush.xpose.msra.mxu0 %v196
    %v198 = vand.u32 %v56, 4294901760
    %199 = vmatmul.f32.gmra.mxu0 %v198
    %v200 = vpop.f32.mrf.mxu0
    %v201 = vadd.f32 %v179, %v200
    %202 = vdwg.mxu0
    %v203 = vsub.f32 0.0, %v201
    %v204 = vmul.f32 %v203, 1.442695
    %v205 = vpow.pop %v204
    %v206 = vadd.f32 %v205, 1.0
    %v207 = vrcp.pop %v206
    %v208 = vmul.f32 %v206, %v207
    %v209 = vsub.f32 1.0, %v208
    %v210 = vmul.f32 %v207, %v209
    %v211 = vadd.f32 %v207, %v210
    %vm212 = vweird.f32 %v206
    %vm213 = vweird.f32 %v207
    %vm214 = vmor %vm212, %vm213
    %v215 = vsel %vm214, %v207, %v211
    %v216 = vand.u32 2147483647, %v206
    %vm217 = vcmp.eq.f32.partialorder %v216, 8.507059e+37
    %v218 = vand.u32 %v206, 2147483648
    %v219 = vor.u32 1.1754944e-38, %v218
    %v220 = vsel %vm217, %v219, %v215
    %v221 = vmul.f32 1.0, %v220
    %vm222 = vcmask 57344
    %223 = vst.msk [vmem:[#allocation7] sm:$0x1] %vm222, %v221
    // Predicated region
    $region18: #{tpu_custom_call.1} parent=1 // pred_check
      _
    $region19: #{tpu_custom_call.1} parent=1 // pred_check_branch
      %225 = sbr.rel (0) target = $region21
    $region20: #{tpu_custom_call.1} parent=1 // pred_region
      %227 = vsyncadd [#allocation4], 0
      %s229 = sshll.u32 [#allocation7], 4
      %s230 = int_to_ptr.vmem [resolvable:$true] %s229
      %s231 = sshll.u32 %s2, 4
      %s232 = int_to_ptr.hbm [resolvable:$true] %s231
      %234 = dma.vmem_to_hbm [thread:$0]  %s230, 16, %s232, [#allocation4]
    $region21: #{tpu_custom_call.1} parent=1 // pred_fallthru
      _
    // Predicated region
    $region22: #{tpu_custom_call.1} parent=1 // pred_check
      _
    $region23: #{tpu_custom_call.1} parent=1 // pred_check_branch
      %236 = sbr.rel (0) target = $region25
    $region24: #{tpu_custom_call.1} parent=1 // pred_region
      %238 = dma.done [#allocation4], 16
    $region25: #{tpu_custom_call.1} parent=1 // pred_fallthru
      _
    %239 = vsyncpa [#allocation3], 1
    %240 = vsyncpa [#allocation6], 1
    %241 = vsyncpa [#allocation4], 1

</llo_original>
